<compile_context>
chip_gen: v6e
topology: v6e:2x2x1
jax: 0.10.0
libtpu: 0.0.40
codegen_flags: <defaults>
</compile_context>

<pallas_src>
import jax
import jax.numpy as jnp
from jax import lax
from jax.experimental import pallas as pl
from jax.experimental.pallas import tpu as pltpu


def pole_agent_kernel(y0_ref, u_ref, lr_ref, li_ref, bnf_t_ref,
                      wy2x_t_ref, by2x_ref, wx2y_t_ref, bx2y_ref,
                      y_ref, x_ref):
    """Single-program kernel, all operands VMEM-resident.

    y0_ref:     (batch, Ny)
    u_ref:      (Nhrz*batch, Nu)         time-major flattened U
    lr_ref/li_ref: (1, Nh//2)            discrete-pole real/imag parts
    bnf_t_ref:  (Nu, Nh)                 (B * nf[:, None]).T  (nf pre-folded)
    wy2x_t_ref: (Ny, Nh), by2x_ref: (1, Nh)
    wx2y_t_ref: (Nh, Ny), bx2y_ref: (1, Ny)
    y_ref:      ((Nhrz+1)*batch, Ny)     output (time-major flattened)
    x_ref:      ((Nhrz+1)*batch, Nh)     VMEM scratch: state history
    """
    batch = y0_ref.shape[0]
    nhrz = u_ref.shape[0] // batch
    nhalf = lr_ref.shape[1]

    lr = lr_ref[...]          # (1, Nh/2)
    li = li_ref[...]          # (1, Nh/2)

    # x0 = y2x(y0)  -> rows [0, batch) of the history scratch.
    x0 = (jnp.dot(y0_ref[...], wy2x_t_ref[...],
                  preferred_element_type=jnp.float32) + by2x_ref[...])
    x_ref[pl.ds(0, batch), :] = x0

    # Drive term for every step in ONE bulk MXU matmul (nf folded into B).
    # Stored into rows [batch, (Nhrz+1)*batch); each row block will be
    # overwritten in-place with the corresponding state below.
    bu_all = jnp.dot(u_ref[...], bnf_t_ref[...],
                     preferred_element_type=jnp.float32)
    x_ref[pl.ds(batch, nhrz * batch), :] = bu_all

    # Serial recurrence on the VPU: A is [[diag(lr), -diag(li)],
    #                                     [diag(li),  diag(lr)]]
    # so   x @ A.T = [x1*lr - x2*li,  x1*li + x2*lr].
    def body(k, x):
        x1 = x[:, :nhalf]
        x2 = x[:, nhalf:]
        rot = jnp.concatenate([x1 * lr - x2 * li, x1 * li + x2 * lr], axis=-1)
        row = pl.multiple_of((k + 1) * batch, batch)
        x_new = rot + x_ref[pl.ds(row, batch), :]   # scratch row holds Bu[k]
        x_ref[pl.ds(row, batch), :] = x_new
        return x_new

    lax.fori_loop(0, nhrz, body, x0, unroll=True)

    # Deferred output projection: one bulk matmul + one bulk store.
    y_ref[...] = (jnp.dot(x_ref[...], wx2y_t_ref[...],
                          preferred_element_type=jnp.float32) + bx2y_ref[...])


def _padded_vmem_bytes_2d(r, c, itemsize=4):
    """f32 2D VMEM footprint with (8, 128) tile padding."""
    return ((r + 7) // 8 * 8) * ((c + 127) // 128 * 128) * itemsize


def init_params(key, Ny, Nu, Nhidden, damping_constant_initial=0.9):
    assert Nhidden % 2 == 0
    assert damping_constant_initial < 1.0
    k_imag, k_B, k_wy2x, k_by2x, k_wx2y, k_bx2y = jax.random.split(key, 6)
    lmbd_cont_real = -jnp.log(damping_constant_initial) * jnp.ones(
        (Nhidden // 2,), jnp.float32)
    lmbd_cont_imag = jax.random.uniform(k_imag, (Nhidden // 2,), jnp.float32)
    B = jax.random.normal(k_B, (Nhidden, Nu), jnp.float32) / jnp.sqrt(
        jnp.float32(Nu))
    # nn.Linear default init: U(-1/sqrt(fan_in), 1/sqrt(fan_in))
    bnd_y2x = 1.0 / jnp.sqrt(jnp.float32(Ny))
    W_y2x = jax.random.uniform(k_wy2x, (Nhidden, Ny), jnp.float32,
                               -bnd_y2x, bnd_y2x)
    b_y2x = jax.random.uniform(k_by2x, (Nhidden,), jnp.float32,
                               -bnd_y2x, bnd_y2x)
    bnd_x2y = 1.0 / jnp.sqrt(jnp.float32(Nhidden))
    W_x2y = jax.random.uniform(k_wx2y, (Ny, Nhidden), jnp.float32,
                               -bnd_x2y, bnd_x2y)
    b_x2y = jax.random.uniform(k_bx2y, (Ny,), jnp.float32,
                               -bnd_x2y, bnd_x2y)
    return dict(lmbd_cont_real=lmbd_cont_real, lmbd_cont_imag=lmbd_cont_imag,
                B=B, W_y2x=W_y2x, b_y2x=b_y2x, W_x2y=W_x2y, b_x2y=b_x2y)


def pole_agent003_forward(y0, U, params):
    """y0: (batch, Ny), U: (Nhrz, batch, Nu) -> Y: (Nhrz+1, batch, Ny)."""
    batch, Ny = y0.shape
    Nhrz, _, Nu = U.shape
    Nhidden = params["B"].shape[0]
    Nhalf = Nhidden // 2

    # Tiny parameter glue (plain JAX) — no dense A matrix is ever built.
    lcr = params["lmbd_cont_real"]
    lci = params["lmbd_cont_imag"]
    r = jnp.exp(-jnp.abs(lcr))
    theta = (jnp.pi / 2.0) * lci
    lr = (r * jnp.cos(theta))[None, :]                       # (1, Nh/2)
    li = (r * jnp.sin(theta))[None, :]                       # (1, Nh/2)
    nf_half = jnp.sqrt(1.0 - jnp.exp(-2.0 * jnp.abs(lcr)))
    nf = jnp.concatenate([nf_half, nf_half])                 # (Nh,)
    Bnf_t = (params["B"] * nf[:, None]).T                    # (Nu, Nh)

    y0_f = y0.astype(jnp.float32)
    U_flat = U.astype(jnp.float32).reshape(Nhrz * batch, Nu)  # time-major rows

    operand_shapes = [
        (batch, Ny), (Nhrz * batch, Nu), (1, Nhalf), (1, Nhalf),
        (Nu, Nhidden), (Ny, Nhidden), (1, Nhidden), (Nhidden, Ny), (1, Ny),
        ((Nhrz + 1) * batch, Ny),          # output
        ((Nhrz + 1) * batch, Nhidden),     # scratch
    ]
    need = sum(_padded_vmem_bytes_2d(r, c) for r, c in operand_shapes)
    vmem_limit = int(min(max(2 * need + (1 << 20), 32 * 1024 * 1024),
                         64 * 1024 * 1024))

    vmem = pl.BlockSpec(memory_space=pltpu.MemorySpace.VMEM)
    out_shape = jax.ShapeDtypeStruct(((Nhrz + 1) * batch, Ny), jnp.float32)

    Y_flat = pl.pallas_call(
        pole_agent_kernel,
        out_shape=out_shape,
        in_specs=[vmem] * 9,
        out_specs=vmem,
        scratch_shapes=[pltpu.VMEM(((Nhrz + 1) * batch, Nhidden), jnp.float32)],
        compiler_params=pltpu.CompilerParams(vmem_limit_bytes=vmem_limit),
    )(
        y0_f,
        U_flat,
        lr, li,
        Bnf_t,
        params["W_y2x"].T,                    # (Ny, Nh)
        params["b_y2x"][None, :],             # (1, Nh)
        params["W_x2y"].T,                    # (Nh, Ny)
        params["b_x2y"][None, :],             # (1, Ny)
    )
    return Y_flat.reshape(Nhrz + 1, batch, Ny)


def pole_agent003_reference(y0, U, params):
    """Pure-JAX reference mirroring the torch forward, for verification."""
    lcr = params["lmbd_cont_real"]
    lci = params["lmbd_cont_imag"]
    r = jnp.exp(-jnp.abs(lcr))
    theta = (jnp.pi / 2.0) * lci
    lr = r * jnp.cos(theta)
    li = r * jnp.sin(theta)
    nf_tmp = jnp.sqrt(1.0 - jnp.exp(-2.0 * jnp.abs(lcr)))
    nf = jnp.concatenate([nf_tmp, nf_tmp])
    A = jnp.concatenate(
        [jnp.concatenate([jnp.diag(lr), -jnp.diag(li)], axis=1),
         jnp.concatenate([jnp.diag(li), jnp.diag(lr)], axis=1)], axis=0)
    Bu = jnp.matmul(U, params["B"].T) * nf
    x = y0 @ params["W_y2x"].T + params["b_y2x"]
    X = [x]
    for k in range(U.shape[0]):
        x = x @ A.T + Bu[k]
        X.append(x)
    X = jnp.stack(X, axis=0)
    return X @ params["W_x2y"].T + params["b_x2y"]


if __name__ == "__main__":
    Ny, Nu, Nhidden = 4, 3, 32
    batch, Nhrz = 8, 8          # batch=8 keeps sublane slices tile-aligned
    damping = 0.9

    key = jax.random.PRNGKey(0)
    k_params, k_y0, k_U = jax.random.split(key, 3)
    params = init_params(k_params, Ny, Nu, Nhidden, damping)

    y0 = jax.random.normal(k_y0, (batch, Ny), jnp.float32)
    U = jax.random.normal(k_U, (Nhrz, batch, Nu), jnp.float32)

    Y = jax.block_until_ready(pole_agent003_forward(y0, U, params))
    Y_ref = jax.block_until_ready(pole_agent003_reference(y0, U, params))

    assert Y.shape == (Nhrz + 1, batch, Ny)
    assert jnp.allclose(Y, Y_ref, atol=1e-4, rtol=1e-4), "mismatch vs reference"

    print("KERNEL_OK")
</pallas_src>

<mosaic_0001>
module attributes {stable_mosaic.version = 11 : i64} {
  func.func @pole_agent_kernel(%arg0: memref<8x4xf32, #tpu.memory_space<vmem>>, %arg1: memref<64x3xf32, #tpu.memory_space<vmem>>, %arg2: memref<1x16xf32, #tpu.memory_space<vmem>>, %arg3: memref<1x16xf32, #tpu.memory_space<vmem>>, %arg4: memref<3x32xf32, #tpu.memory_space<vmem>>, %arg5: memref<4x32xf32, #tpu.memory_space<vmem>>, %arg6: memref<1x32xf32, #tpu.memory_space<vmem>>, %arg7: memref<32x4xf32, #tpu.memory_space<vmem>>, %arg8: memref<1x4xf32, #tpu.memory_space<vmem>>, %arg9: memref<72x4xf32, #tpu.memory_space<vmem>>, %arg10: memref<72x32xf32, #tpu.memory_space<vmem>>) attributes {dimension_semantics = [], scalar_prefetch = 0 : i64, scratch_operands = 1 : i64, tpu.core_type = #tpu.core_type<tc>} {
    %c0 = arith.constant 0 : index
    %c0_0 = arith.constant 0 : index
    %0 = vector.load %arg2[%c0, %c0_0] : memref<1x16xf32, #tpu.memory_space<vmem>>, vector<1x16xf32>
    %c0_1 = arith.constant 0 : index
    %c0_2 = arith.constant 0 : index
    %1 = vector.load %arg3[%c0_1, %c0_2] : memref<1x16xf32, #tpu.memory_space<vmem>>, vector<1x16xf32>
    %c0_3 = arith.constant 0 : index
    %c0_4 = arith.constant 0 : index
    %2 = vector.load %arg0[%c0_3, %c0_4] : memref<8x4xf32, #tpu.memory_space<vmem>>, vector<8x4xf32>
    %c0_5 = arith.constant 0 : index
    %c0_6 = arith.constant 0 : index
    %3 = vector.load %arg5[%c0_5, %c0_6] : memref<4x32xf32, #tpu.memory_space<vmem>>, vector<4x32xf32>
    %cst = arith.constant dense<0.000000e+00> : vector<8x32xf32>
    %4 = tpu.matmul %2, %3, %cst {dimension_numbers = #tpu.dot_dimension_numbers<[1], [0], [0], [1], [0, 0, 1, 1], [], []>} : vector<8x4xf32>, vector<4x32xf32>, vector<8x32xf32> -> vector<8x32xf32>
    %c0_7 = arith.constant 0 : index
    %c0_8 = arith.constant 0 : index
    %5 = vector.load %arg6[%c0_7, %c0_8] : memref<1x32xf32, #tpu.memory_space<vmem>>, vector<1x32xf32>
    %6 = vector.broadcast %5 : vector<1x32xf32> to vector<8x32xf32>
    %7 = arith.addf %4, %6 : vector<8x32xf32>
    %c0_9 = arith.constant 0 : index
    %c0_10 = arith.constant 0 : index
    %8 = vector.load %arg10[%c0_9, %c0_10] : memref<72x32xf32, #tpu.memory_space<vmem>>, vector<8x32xf32>
    tpu.vector_store %arg10[%c0_9, %c0_10], %7 {strides = array<i32>} : memref<72x32xf32, #tpu.memory_space<vmem>>, vector<8x32xf32>,
    %c0_11 = arith.constant 0 : index
    %c0_12 = arith.constant 0 : index
    %9 = vector.load %arg1[%c0_11, %c0_12] : memref<64x3xf32, #tpu.memory_space<vmem>>, vector<64x3xf32>
    %c0_13 = arith.constant 0 : index
    %c0_14 = arith.constant 0 : index
    %10 = vector.load %arg4[%c0_13, %c0_14] : memref<3x32xf32, #tpu.memory_space<vmem>>, vector<3x32xf32>
    %cst_15 = arith.constant dense<0.000000e+00> : vector<64x32xf32>
    %11 = tpu.matmul %9, %10, %cst_15 {dimension_numbers = #tpu.dot_dimension_numbers<[1], [0], [0], [1], [0, 0, 1, 1], [], []>} : vector<64x3xf32>, vector<3x32xf32>, vector<64x32xf32> -> vector<64x32xf32>
    %c8 = arith.constant 8 : index
    %c0_16 = arith.constant 0 : index
    %12 = vector.load %arg10[%c8, %c0_16] : memref<72x32xf32, #tpu.memory_space<vmem>>, vector<64x32xf32>
    tpu.vector_store %arg10[%c8, %c0_16], %11 {strides = array<i32>} : memref<72x32xf32, #tpu.memory_space<vmem>>, vector<64x32xf32>,
    %c0_i32 = arith.constant 0 : i32
    %13 = vector.extract_strided_slice %7 {offsets = [0, 0], sizes = [8, 16], strides = [1, 1]} : vector<8x32xf32> to vector<8x16xf32>
    %14 = vector.extract_strided_slice %7 {offsets = [0, 16], sizes = [8, 16], strides = [1, 1]} : vector<8x32xf32> to vector<8x16xf32>
    %15 = vector.broadcast %0 : vector<1x16xf32> to vector<8x16xf32>
    %16 = arith.mulf %13, %15 : vector<8x16xf32>
    %17 = vector.broadcast %1 : vector<1x16xf32> to vector<8x16xf32>
    %18 = arith.mulf %14, %17 : vector<8x16xf32>
    %19 = arith.subf %16, %18 : vector<8x16xf32>
    %20 = vector.broadcast %1 : vector<1x16xf32> to vector<8x16xf32>
    %21 = arith.mulf %13, %20 : vector<8x16xf32>
    %22 = vector.broadcast %0 : vector<1x16xf32> to vector<8x16xf32>
    %23 = arith.mulf %14, %22 : vector<8x16xf32>
    %24 = arith.addf %21, %23 : vector<8x16xf32>
    %25 = tpu.concatenate %19, %24 in 1 : vector<8x16xf32>, vector<8x16xf32> -> vector<8x32xf32>
    %c1_i32 = arith.constant 1 : i32
    %26 = arith.addi %c0_i32, %c1_i32 : i32
    %c8_i32 = arith.constant 8 : i32
    %27 = arith.muli %26, %c8_i32 : i32
    %28 = tpu.assume_multiple %27, 8 : i32
    %29 = arith.index_cast %28 : i32 to index
    %c0_17 = arith.constant 0 : index
    %30 = vector.load %arg10[%29, %c0_17] : memref<72x32xf32, #tpu.memory_space<vmem>>, vector<8x32xf32>
    %31 = arith.addf %25, %30 : vector<8x32xf32>
    %32 = arith.index_cast %28 : i32 to index
    %c0_18 = arith.constant 0 : index
    %33 = vector.load %arg10[%32, %c0_18] : memref<72x32xf32, #tpu.memory_space<vmem>>, vector<8x32xf32>
    tpu.vector_store %arg10[%32, %c0_18], %31 {strides = array<i32>} : memref<72x32xf32, #tpu.memory_space<vmem>>, vector<8x32xf32>,
    %c1_i32_19 = arith.constant 1 : i32
    %34 = vector.extract_strided_slice %31 {offsets = [0, 0], sizes = [8, 16], strides = [1, 1]} : vector<8x32xf32> to vector<8x16xf32>
    %35 = vector.extract_strided_slice %31 {offsets = [0, 16], sizes = [8, 16], strides = [1, 1]} : vector<8x32xf32> to vector<8x16xf32>
    %36 = vector.broadcast %0 : vector<1x16xf32> to vector<8x16xf32>
    %37 = arith.mulf %34, %36 : vector<8x16xf32>
    %38 = vector.broadcast %1 : vector<1x16xf32> to vector<8x16xf32>
    %39 = arith.mulf %35, %38 : vector<8x16xf32>
    %40 = arith.subf %37, %39 : vector<8x16xf32>
    %41 = vector.broadcast %1 : vector<1x16xf32> to vector<8x16xf32>
    %42 = arith.mulf %34, %41 : vector<8x16xf32>
    %43 = vector.broadcast %0 : vector<1x16xf32> to vector<8x16xf32>
    %44 = arith.mulf %35, %43 : vector<8x16xf32>
    %45 = arith.addf %42, %44 : vector<8x16xf32>
    %46 = tpu.concatenate %40, %45 in 1 : vector<8x16xf32>, vector<8x16xf32> -> vector<8x32xf32>
    %c1_i32_20 = arith.constant 1 : i32
    %47 = arith.addi %c1_i32_19, %c1_i32_20 : i32
    %c8_i32_21 = arith.constant 8 : i32
    %48 = arith.muli %47, %c8_i32_21 : i32
    %49 = tpu.assume_multiple %48, 8 : i32
    %50 = arith.index_cast %49 : i32 to index
    %c0_22 = arith.constant 0 : index
    %51 = vector.load %arg10[%50, %c0_22] : memref<72x32xf32, #tpu.memory_space<vmem>>, vector<8x32xf32>
    %52 = arith.addf %46, %51 : vector<8x32xf32>
    %53 = arith.index_cast %49 : i32 to index
    %c0_23 = arith.constant 0 : index
    %54 = vector.load %arg10[%53, %c0_23] : memref<72x32xf32, #tpu.memory_space<vmem>>, vector<8x32xf32>
    tpu.vector_store %arg10[%53, %c0_23], %52 {strides = array<i32>} : memref<72x32xf32, #tpu.memory_space<vmem>>, vector<8x32xf32>,
    %c2_i32 = arith.constant 2 : i32
    %55 = vector.extract_strided_slice %52 {offsets = [0, 0], sizes = [8, 16], strides = [1, 1]} : vector<8x32xf32> to vector<8x16xf32>
    %56 = vector.extract_strided_slice %52 {offsets = [0, 16], sizes = [8, 16], strides = [1, 1]} : vector<8x32xf32> to vector<8x16xf32>
    %57 = vector.broadcast %0 : vector<1x16xf32> to vector<8x16xf32>
    %58 = arith.mulf %55, %57 : vector<8x16xf32>
    %59 = vector.broadcast %1 : vector<1x16xf32> to vector<8x16xf32>
    %60 = arith.mulf %56, %59 : vector<8x16xf32>
    %61 = arith.subf %58, %60 : vector<8x16xf32>
    %62 = vector.broadcast %1 : vector<1x16xf32> to vector<8x16xf32>
    %63 = arith.mulf %55, %62 : vector<8x16xf32>
    %64 = vector.broadcast %0 : vector<1x16xf32> to vector<8x16xf32>
    %65 = arith.mulf %56, %64 : vector<8x16xf32>
    %66 = arith.addf %63, %65 : vector<8x16xf32>
    %67 = tpu.concatenate %61, %66 in 1 : vector<8x16xf32>, vector<8x16xf32> -> vector<8x32xf32>
    %c1_i32_24 = arith.constant 1 : i32
    %68 = arith.addi %c2_i32, %c1_i32_24 : i32
    %c8_i32_25 = arith.constant 8 : i32
    %69 = arith.muli %68, %c8_i32_25 : i32
    %70 = tpu.assume_multiple %69, 8 : i32
    %71 = arith.index_cast %70 : i32 to index
    %c0_26 = arith.constant 0 : index
    %72 = vector.load %arg10[%71, %c0_26] : memref<72x32xf32, #tpu.memory_space<vmem>>, vector<8x32xf32>
    %73 = arith.addf %67, %72 : vector<8x32xf32>
    %74 = arith.index_cast %70 : i32 to index
    %c0_27 = arith.constant 0 : index
    %75 = vector.load %arg10[%74, %c0_27] : memref<72x32xf32, #tpu.memory_space<vmem>>, vector<8x32xf32>
    tpu.vector_store %arg10[%74, %c0_27], %73 {strides = array<i32>} : memref<72x32xf32, #tpu.memory_space<vmem>>, vector<8x32xf32>,
    %c3_i32 = arith.constant 3 : i32
    %76 = vector.extract_strided_slice %73 {offsets = [0, 0], sizes = [8, 16], strides = [1, 1]} : vector<8x32xf32> to vector<8x16xf32>
    %77 = vector.extract_strided_slice %73 {offsets = [0, 16], sizes = [8, 16], strides = [1, 1]} : vector<8x32xf32> to vector<8x16xf32>
    %78 = vector.broadcast %0 : vector<1x16xf32> to vector<8x16xf32>
    %79 = arith.mulf %76, %78 : vector<8x16xf32>
    %80 = vector.broadcast %1 : vector<1x16xf32> to vector<8x16xf32>
    %81 = arith.mulf %77, %80 : vector<8x16xf32>
    %82 = arith.subf %79, %81 : vector<8x16xf32>
    %83 = vector.broadcast %1 : vector<1x16xf32> to vector<8x16xf32>
    %84 = arith.mulf %76, %83 : vector<8x16xf32>
    %85 = vector.broadcast %0 : vector<1x16xf32> to vector<8x16xf32>
    %86 = arith.mulf %77, %85 : vector<8x16xf32>
    %87 = arith.addf %84, %86 : vector<8x16xf32>
    %88 = tpu.concatenate %82, %87 in 1 : vector<8x16xf32>, vector<8x16xf32> -> vector<8x32xf32>
    %c1_i32_28 = arith.constant 1 : i32
    %89 = arith.addi %c3_i32, %c1_i32_28 : i32
    %c8_i32_29 = arith.constant 8 : i32
    %90 = arith.muli %89, %c8_i32_29 : i32
    %91 = tpu.assume_multiple %90, 8 : i32
    %92 = arith.index_cast %91 : i32 to index
    %c0_30 = arith.constant 0 : index
    %93 = vector.load %arg10[%92, %c0_30] : memref<72x32xf32, #tpu.memory_space<vmem>>, vector<8x32xf32>
    %94 = arith.addf %88, %93 : vector<8x32xf32>
    %95 = arith.index_cast %91 : i32 to index
    %c0_31 = arith.constant 0 : index
    %96 = vector.load %arg10[%95, %c0_31] : memref<72x32xf32, #tpu.memory_space<vmem>>, vector<8x32xf32>
    tpu.vector_store %arg10[%95, %c0_31], %94 {strides = array<i32>} : memref<72x32xf32, #tpu.memory_space<vmem>>, vector<8x32xf32>,
    %c4_i32 = arith.constant 4 : i32
    %97 = vector.extract_strided_slice %94 {offsets = [0, 0], sizes = [8, 16], strides = [1, 1]} : vector<8x32xf32> to vector<8x16xf32>
    %98 = vector.extract_strided_slice %94 {offsets = [0, 16], sizes = [8, 16], strides = [1, 1]} : vector<8x32xf32> to vector<8x16xf32>
    %99 = vector.broadcast %0 : vector<1x16xf32> to vector<8x16xf32>
    %100 = arith.mulf %97, %99 : vector<8x16xf32>
    %101 = vector.broadcast %1 : vector<1x16xf32> to vector<8x16xf32>
    %102 = arith.mulf %98, %101 : vector<8x16xf32>
    %103 = arith.subf %100, %102 : vector<8x16xf32>
    %104 = vector.broadcast %1 : vector<1x16xf32> to vector<8x16xf32>
    %105 = arith.mulf %97, %104 : vector<8x16xf32>
    %106 = vector.broadcast %0 : vector<1x16xf32> to vector<8x16xf32>
    %107 = arith.mulf %98, %106 : vector<8x16xf32>
    %108 = arith.addf %105, %107 : vector<8x16xf32>
    %109 = tpu.concatenate %103, %108 in 1 : vector<8x16xf32>, vector<8x16xf32> -> vector<8x32xf32>
    %c1_i32_32 = arith.constant 1 : i32
    %110 = arith.addi %c4_i32, %c1_i32_32 : i32
    %c8_i32_33 = arith.constant 8 : i32
    %111 = arith.muli %110, %c8_i32_33 : i32
    %112 = tpu.assume_multiple %111, 8 : i32
    %113 = arith.index_cast %112 : i32 to index
    %c0_34 = arith.constant 0 : index
    %114 = vector.load %arg10[%113, %c0_34] : memref<72x32xf32, #tpu.memory_space<vmem>>, vector<8x32xf32>
    %115 = arith.addf %109, %114 : vector<8x32xf32>
    %116 = arith.index_cast %112 : i32 to index
    %c0_35 = arith.constant 0 : index
    %117 = vector.load %arg10[%116, %c0_35] : memref<72x32xf32, #tpu.memory_space<vmem>>, vector<8x32xf32>
    tpu.vector_store %arg10[%116, %c0_35], %115 {strides = array<i32>} : memref<72x32xf32, #tpu.memory_space<vmem>>, vector<8x32xf32>,
    %c5_i32 = arith.constant 5 : i32
    %118 = vector.extract_strided_slice %115 {offsets = [0, 0], sizes = [8, 16], strides = [1, 1]} : vector<8x32xf32> to vector<8x16xf32>
    %119 = vector.extract_strided_slice %115 {offsets = [0, 16], sizes = [8, 16], strides = [1, 1]} : vector<8x32xf32> to vector<8x16xf32>
    %120 = vector.broadcast %0 : vector<1x16xf32> to vector<8x16xf32>
    %121 = arith.mulf %118, %120 : vector<8x16xf32>
    %122 = vector.broadcast %1 : vector<1x16xf32> to vector<8x16xf32>
    %123 = arith.mulf %119, %122 : vector<8x16xf32>
    %124 = arith.subf %121, %123 : vector<8x16xf32>
    %125 = vector.broadcast %1 : vector<1x16xf32> to vector<8x16xf32>
    %126 = arith.mulf %118, %125 : vector<8x16xf32>
    %127 = vector.broadcast %0 : vector<1x16xf32> to vector<8x16xf32>
    %128 = arith.mulf %119, %127 : vector<8x16xf32>
    %129 = arith.addf %126, %128 : vector<8x16xf32>
    %130 = tpu.concatenate %124, %129 in 1 : vector<8x16xf32>, vector<8x16xf32> -> vector<8x32xf32>
    %c1_i32_36 = arith.constant 1 : i32
    %131 = arith.addi %c5_i32, %c1_i32_36 : i32
    %c8_i32_37 = arith.constant 8 : i32
    %132 = arith.muli %131, %c8_i32_37 : i32
    %133 = tpu.assume_multiple %132, 8 : i32
    %134 = arith.index_cast %133 : i32 to index
    %c0_38 = arith.constant 0 : index
    %135 = vector.load %arg10[%134, %c0_38] : memref<72x32xf32, #tpu.memory_space<vmem>>, vector<8x32xf32>
    %136 = arith.addf %130, %135 : vector<8x32xf32>
    %137 = arith.index_cast %133 : i32 to index
    %c0_39 = arith.constant 0 : index
    %138 = vector.load %arg10[%137, %c0_39] : memref<72x32xf32, #tpu.memory_space<vmem>>, vector<8x32xf32>
    tpu.vector_store %arg10[%137, %c0_39], %136 {strides = array<i32>} : memref<72x32xf32, #tpu.memory_space<vmem>>, vector<8x32xf32>,
    %c6_i32 = arith.constant 6 : i32
    %139 = vector.extract_strided_slice %136 {offsets = [0, 0], sizes = [8, 16], strides = [1, 1]} : vector<8x32xf32> to vector<8x16xf32>
    %140 = vector.extract_strided_slice %136 {offsets = [0, 16], sizes = [8, 16], strides = [1, 1]} : vector<8x32xf32> to vector<8x16xf32>
    %141 = vector.broadcast %0 : vector<1x16xf32> to vector<8x16xf32>
    %142 = arith.mulf %139, %141 : vector<8x16xf32>
    %143 = vector.broadcast %1 : vector<1x16xf32> to vector<8x16xf32>
    %144 = arith.mulf %140, %143 : vector<8x16xf32>
    %145 = arith.subf %142, %144 : vector<8x16xf32>
    %146 = vector.broadcast %1 : vector<1x16xf32> to vector<8x16xf32>
    %147 = arith.mulf %139, %146 : vector<8x16xf32>
    %148 = vector.broadcast %0 : vector<1x16xf32> to vector<8x16xf32>
    %149 = arith.mulf %140, %148 : vector<8x16xf32>
    %150 = arith.addf %147, %149 : vector<8x16xf32>
    %151 = tpu.concatenate %145, %150 in 1 : vector<8x16xf32>, vector<8x16xf32> -> vector<8x32xf32>
    %c1_i32_40 = arith.constant 1 : i32
    %152 = arith.addi %c6_i32, %c1_i32_40 : i32
    %c8_i32_41 = arith.constant 8 : i32
    %153 = arith.muli %152, %c8_i32_41 : i32
    %154 = tpu.assume_multiple %153, 8 : i32
    %155 = arith.index_cast %154 : i32 to index
    %c0_42 = arith.constant 0 : index
    %156 = vector.load %arg10[%155, %c0_42] : memref<72x32xf32, #tpu.memory_space<vmem>>, vector<8x32xf32>
    %157 = arith.addf %151, %156 : vector<8x32xf32>
    %158 = arith.index_cast %154 : i32 to index
    %c0_43 = arith.constant 0 : index
    %159 = vector.load %arg10[%158, %c0_43] : memref<72x32xf32, #tpu.memory_space<vmem>>, vector<8x32xf32>
    tpu.vector_store %arg10[%158, %c0_43], %157 {strides = array<i32>} : memref<72x32xf32, #tpu.memory_space<vmem>>, vector<8x32xf32>,
    %c7_i32 = arith.constant 7 : i32
    %160 = vector.extract_strided_slice %157 {offsets = [0, 0], sizes = [8, 16], strides = [1, 1]} : vector<8x32xf32> to vector<8x16xf32>
    %161 = vector.extract_strided_slice %157 {offsets = [0, 16], sizes = [8, 16], strides = [1, 1]} : vector<8x32xf32> to vector<8x16xf32>
    %162 = vector.broadcast %0 : vector<1x16xf32> to vector<8x16xf32>
    %163 = arith.mulf %160, %162 : vector<8x16xf32>
    %164 = vector.broadcast %1 : vector<1x16xf32> to vector<8x16xf32>
    %165 = arith.mulf %161, %164 : vector<8x16xf32>
    %166 = arith.subf %163, %165 : vector<8x16xf32>
    %167 = vector.broadcast %1 : vector<1x16xf32> to vector<8x16xf32>
    %168 = arith.mulf %160, %167 : vector<8x16xf32>
    %169 = vector.broadcast %0 : vector<1x16xf32> to vector<8x16xf32>
    %170 = arith.mulf %161, %169 : vector<8x16xf32>
    %171 = arith.addf %168, %170 : vector<8x16xf32>
    %172 = tpu.concatenate %166, %171 in 1 : vector<8x16xf32>, vector<8x16xf32> -> vector<8x32xf32>
    %c1_i32_44 = arith.constant 1 : i32
    %173 = arith.addi %c7_i32, %c1_i32_44 : i32
    %c8_i32_45 = arith.constant 8 : i32
    %174 = arith.muli %173, %c8_i32_45 : i32
    %175 = tpu.assume_multiple %174, 8 : i32
    %176 = arith.index_cast %175 : i32 to index
    %c0_46 = arith.constant 0 : index
    %177 = vector.load %arg10[%176, %c0_46] : memref<72x32xf32, #tpu.memory_space<vmem>>, vector<8x32xf32>
    %178 = arith.addf %172, %177 : vector<8x32xf32>
    %179 = arith.index_cast %175 : i32 to index
    %c0_47 = arith.constant 0 : index
    %180 = vector.load %arg10[%179, %c0_47] : memref<72x32xf32, #tpu.memory_space<vmem>>, vector<8x32xf32>
    tpu.vector_store %arg10[%179, %c0_47], %178 {strides = array<i32>} : memref<72x32xf32, #tpu.memory_space<vmem>>, vector<8x32xf32>,
    %c8_i32_48 = arith.constant 8 : i32
    %c0_49 = arith.constant 0 : index
    %c0_50 = arith.constant 0 : index
    %181 = vector.load %arg10[%c0_49, %c0_50] : memref<72x32xf32, #tpu.memory_space<vmem>>, vector<72x32xf32>
    %c0_51 = arith.constant 0 : index
    %c0_52 = arith.constant 0 : index
    %182 = vector.load %arg7[%c0_51, %c0_52] : memref<32x4xf32, #tpu.memory_space<vmem>>, vector<32x4xf32>
    %cst_53 = arith.constant dense<0.000000e+00> : vector<72x4xf32>
    %183 = tpu.matmul %181, %182, %cst_53 {dimension_numbers = #tpu.dot_dimension_numbers<[1], [0], [0], [1], [0, 0, 1, 1], [], []>} : vector<72x32xf32>, vector<32x4xf32>, vector<72x4xf32> -> vector<72x4xf32>
    %c0_54 = arith.constant 0 : index
    %c0_55 = arith.constant 0 : index
    %184 = vector.load %arg8[%c0_54, %c0_55] : memref<1x4xf32, #tpu.memory_space<vmem>>, vector<1x4xf32>
    %185 = vector.broadcast %184 : vector<1x4xf32> to vector<72x4xf32>
    %186 = arith.addf %183, %185 : vector<72x4xf32>
    %c0_56 = arith.constant 0 : index
    %c0_57 = arith.constant 0 : index
    %187 = vector.load %arg9[%c0_56, %c0_57] : memref<72x4xf32, #tpu.memory_space<vmem>>, vector<72x4xf32>
    tpu.vector_store %arg9[%c0_56, %c0_57], %186 {strides = array<i32>} : memref<72x4xf32, #tpu.memory_space<vmem>>, vector<72x4xf32>,
    return
  }
}

</mosaic_0001>

<llo_original>
// kernel: tpu_custom_call.1
$region0: #{tpu_custom_call.1}
  #allocation0 [shape = 'u32[]', space=smem, size = 0x4, offset = 0x4, fixed_abs, tag = 'smem constant byte address 0x4 - core index']
  #allocation1 [shape = 'u32[144,128]{1,0:T(1,128)}', space=vmem, size = 0x12000, scoped, tag = 'internal scratch']
  #allocation2 [shape = 'f32[72,32]{1,0:T(8,128)}', space=vmem, size = 0x9000, scoped, tag = 'scratch operand']
  %s0 = inlined_call_operand.vmem [shape: f32[8,4], index: 0, kind: input, shape index: {}]
  %s1 = inlined_call_operand.vmem [shape: f32[64,3], index: 1, kind: input, shape index: {}]
  %s2 = inlined_call_operand.vmem [shape: f32[1,16], index: 2, kind: input, shape index: {}]
  %s3 = inlined_call_operand.vmem [shape: f32[1,16], index: 3, kind: input, shape index: {}]
  %s4 = inlined_call_operand.vmem [shape: f32[3,32], index: 4, kind: input, shape index: {}]
  %s5 = inlined_call_operand.vmem [shape: f32[4,32], index: 5, kind: input, shape index: {}]
  %s6 = inlined_call_operand.vmem [shape: f32[1,32], index: 6, kind: input, shape index: {}]
  %s7 = inlined_call_operand.vmem [shape: f32[32,4], index: 7, kind: input, shape index: {}]
  %s8 = inlined_call_operand.vmem [shape: f32[1,4], index: 8, kind: input, shape index: {}]
  %s9 = inlined_call_operand.vmem [shape: f32[72,4], index: 9, kind: output, shape index: {}]
  %s10 = sld [smem:[#allocation0]]
  $region46: #{tpu_custom_call.1} parent=0
    _
  %s12 = ssub.s32 1, %s10
  %s13 = scalar_select 0, %s12, %s10
  // Predicated region
  $region2: #{tpu_custom_call.1} parent=0 // pred_check
    _
  $region3: #{tpu_custom_call.1} parent=0 // pred_check_branch
    %15 = sbr.rel (0) target = $region5
  $region4: #{tpu_custom_call.1} parent=0 // pred_region
    _
  $region5: #{tpu_custom_call.1} parent=0 // pred_fallthru
    _
  // Predicated region
  $region6: #{tpu_custom_call.1} parent=0 // pred_check
    _
  $region7: #{tpu_custom_call.1} parent=0 // pred_check_branch
    %17 = sbr.rel (0) target = $region9
  $region8: #{tpu_custom_call.1} parent=0 // pred_region
    _
  $region9: #{tpu_custom_call.1} parent=0 // pred_fallthru
    _
  // Predicated region
  $region10: #{tpu_custom_call.1} parent=0 // pred_check
    _
  $region11: #{tpu_custom_call.1} parent=0 // pred_check_branch
    %19 = sbr.rel (0) target = $region13
  $region12: #{tpu_custom_call.1} parent=0 // pred_region
    _
  $region13: #{tpu_custom_call.1} parent=0 // pred_fallthru
    _
  // Predicated region
  $region14: #{tpu_custom_call.1} parent=0 // pred_check
    _
  $region15: #{tpu_custom_call.1} parent=0 // pred_check_branch
    %21 = sbr.rel (0) target = $region17
  $region16: #{tpu_custom_call.1} parent=0 // pred_region
    _
  $region17: #{tpu_custom_call.1} parent=0 // pred_fallthru
    _
  // Predicated region
  $region18: #{tpu_custom_call.1} parent=0 // pred_check
    _
  $region19: #{tpu_custom_call.1} parent=0 // pred_check_branch
    %23 = sbr.rel (0) target = $region21
  $region20: #{tpu_custom_call.1} parent=0 // pred_region
    _
  $region21: #{tpu_custom_call.1} parent=0 // pred_fallthru
    _
  // Predicated region
  $region22: #{tpu_custom_call.1} parent=0 // pred_check
    _
  $region23: #{tpu_custom_call.1} parent=0 // pred_check_branch
    %25 = sbr.rel (0) target = $region25
  $region24: #{tpu_custom_call.1} parent=0 // pred_region
    _
  $region25: #{tpu_custom_call.1} parent=0 // pred_fallthru
    _
  // Predicated region
  $region26: #{tpu_custom_call.1} parent=0 // pred_check
    _
  $region27: #{tpu_custom_call.1} parent=0 // pred_check_branch
    %27 = sbr.rel (0) target = $region29
  $region28: #{tpu_custom_call.1} parent=0 // pred_region
    _
  $region29: #{tpu_custom_call.1} parent=0 // pred_fallthru
    _
  // Predicated region
  $region30: #{tpu_custom_call.1} parent=0 // pred_check
    _
  $region31: #{tpu_custom_call.1} parent=0 // pred_check_branch
    %29 = sbr.rel (0) target = $region33
  $region32: #{tpu_custom_call.1} parent=0 // pred_region
    _
  $region33: #{tpu_custom_call.1} parent=0 // pred_fallthru
    _
  // Predicated region
  $region34: #{tpu_custom_call.1} parent=0 // pred_check
    _
  $region35: #{tpu_custom_call.1} parent=0 // pred_check_branch
    %31 = sbr.rel (0) target = $region37
  $region36: #{tpu_custom_call.1} parent=0 // pred_region
    _
  $region37: #{tpu_custom_call.1} parent=0 // pred_fallthru
    _
  %v32 = vld [vmem:[%s2] sm:$0x1]
  %v33 = vld [vmem:[%s3] sm:$0x1]
  %v34 = vld [vmem:[%s0] sm:$0xff]
  %v35 = vld [vmem:[%s5] sm:$0xf]
  %v36 = vld [vmem:[%s6] sm:$0x1]
  %v38 = vlaneseq
  %v39 = vshrl.u32 %v38, 7
  %v40 = vsub.s32 0, %v39
  %v41 = vrot.slane %v36, %v40
  %vm43 = vcmask 31744
  %v45 = vsel %vm43, %v34, 0
  %vm47 = vcmask 1043456
  %v49 = vsel %vm47, %v35, 0
  %51 = vmatprep.subr.mxu0 0.0
  %52 = vmatpush1.msra.mxu0 0.0
  %53 = vmatprep.subr.mxu0 0.0
  %54 = vmatpush1.msra.mxu0 0.0
  %55 = vmatprep.subr.mxu0 0.0
  %56 = vmatpush1.msra.mxu0 0.0
  %57 = vmatprep.subr.mxu0 0.0
  %58 = vmatpush1.msra.mxu0 0.0
  %59 = vmatprep.subr.mxu0 0.0
  %60 = vmatpush1.msra.mxu0 0.0
  %61 = vmatprep.subr.mxu0 0.0
  %62 = vmatpush1.msra.mxu0 0.0
  %63 = vmatprep.subr.mxu0 0.0
  %64 = vmatpush1.msra.mxu0 0.0
  %65 = vmatprep.subr.mxu0 0.0
  %66 = vmatpush1.msra.mxu0 0.0
  %67 = vmatprep.subr.mxu0 0.0
  %68 = vmatpush1.msra.mxu0 0.0
  %69 = vmatprep.subr.mxu0 0.0
  %70 = vmatpush1.msra.mxu0 0.0
  %71 = vmatprep.subr.mxu0 0.0
  %72 = vmatpush1.msra.mxu0 0.0
  %73 = vmatprep.subr.mxu0 0.0
  %74 = vmatpush1.msra.mxu0 0.0
  %75 = vmatprep.subr.mxu0 0.0
  %76 = vmatpush1.msra.mxu0 0.0
  %77 = vmatprep.subr.mxu0 0.0
  %78 = vmatpush1.msra.mxu0 0.0
  %79 = vmatprep.subr.mxu0 0.0
  %80 = vmatpush1.msra.mxu0 0.0
  %81 = vmatprep.subr.mxu0 0.0
  %82 = vmatpush1.msra.mxu0 %v49
  %83 = vmatprep.subr.mxu0 0.0
  %84 = vmatpush2.msra.mxu0 0.0
  %85 = vmatprep.subr.mxu0 0.0
  %86 = vmatpush2.msra.mxu0 0.0
  %87 = vmatprep.subr.mxu0 0.0
  %88 = vmatpush2.msra.mxu0 0.0
  %89 = vmatprep.subr.mxu0 0.0
  %90 = vmatpush2.msra.mxu0 0.0
  %91 = vmatprep.subr.mxu0 0.0
  %92 = vmatpush2.msra.mxu0 0.0
  %93 = vmatprep.subr.mxu0 0.0
  %94 = vmatpush2.msra.mxu0 0.0
  %95 = vmatprep.subr.mxu0 0.0
  %96 = vmatpush2.msra.mxu0 0.0
  %97 = vmatprep.subr.mxu0 0.0
  %98 = vmatpush2.msra.mxu0 0.0
  %99 = vmatprep.subr.mxu0 0.0
  %100 = vmatpush2.msra.mxu0 0.0
  %101 = vmatprep.subr.mxu0 0.0
  %102 = vmatpush2.msra.mxu0 0.0
  %103 = vmatprep.subr.mxu0 0.0
  %104 = vmatpush2.msra.mxu0 0.0
  %105 = vmatprep.subr.mxu0 0.0
  %106 = vmatpush2.msra.mxu0 0.0
  %107 = vmatprep.subr.mxu0 0.0
  %108 = vmatpush2.msra.mxu0 0.0
  %109 = vmatprep.subr.mxu0 0.0
  %110 = vmatpush2.msra.mxu0 0.0
  %111 = vmatprep.subr.mxu0 0.0
  %112 = vmatpush2.msra.mxu0 0.0
  %113 = vmatprep.subr.mxu0 0.0
  %114 = vmatpush2.msra.mxu0 0.0
  %115 = vmatprep.mubr.f32.mxu0 0.0
  %116 = vmatmul.mubr.f32.gmra.mxu0 %v45
  %v117 = vpop.f32.mrf.mxu0
  %v118 = vadd.f32 %v41, %v117
  %v119 = vpop.f32.mrf.mxu0
  %120 = vdwg.mxu0
  %vm121 = vcmask 261120
  %122 = vst.msk [vmem:[#allocation2] sm:$0xff] %vm121, %v118
  %v123 = vld [vmem:[%s1] sm:$0xff]
  %v124 = vld [vmem:[%s1 + $0x8] sm:$0xff]
  %v125 = vld [vmem:[%s1 + $0x10] sm:$0xff]
  %v126 = vld [vmem:[%s1 + $0x18] sm:$0xff]
  %v127 = vld [vmem:[%s1 + $0x20] sm:$0xff]
  %v128 = vld [vmem:[%s1 + $0x28] sm:$0xff]
  %v129 = vld [vmem:[%s1 + $0x30] sm:$0xff]
  %v130 = vld [vmem:[%s1 + $0x38] sm:$0xff]
  %v131 = vld [vmem:[%s4] sm:$0x7]
  %vm132 = vcmask 23552
  %v134 = vsel %vm132, %v123, 0
  %v137 = vsel %vm132, %v124, 0
  %v140 = vsel %vm132, %v125, 0
  %v143 = vsel %vm132, %v126, 0
  %v146 = vsel %vm132, %v127, 0
  %v149 = vsel %vm132, %v128, 0
  %v152 = vsel %vm132, %v129, 0
  %v155 = vsel %vm132, %v130, 0
  %vm157 = vcmask 1042432
  %v159 = vsel %vm157, %v131, 0
  %161 = vmatprep.subr.mxu0 0.0
  %162 = vmatpush1.msra.mxu0 0.0
  %163 = vmatprep.subr.mxu0 0.0
  %164 = vmatpush1.msra.mxu0 0.0
  %165 = vmatprep.subr.mxu0 0.0
  %166 = vmatpush1.msra.mxu0 0.0
  %167 = vmatprep.subr.mxu0 0.0
  %168 = vmatpush1.msra.mxu0 0.0
  %169 = vmatprep.subr.mxu0 0.0
  %170 = vmatpush1.msra.mxu0 0.0
  %171 = vmatprep.subr.mxu0 0.0
  %172 = vmatpush1.msra.mxu0 0.0
  %173 = vmatprep.subr.mxu0 0.0
  %174 = vmatpush1.msra.mxu0 0.0
  %175 = vmatprep.subr.mxu0 0.0
  %176 = vmatpush1.msra.mxu0 0.0
  %177 = vmatprep.subr.mxu0 0.0
  %178 = vmatpush1.msra.mxu0 0.0
  %179 = vmatprep.subr.mxu0 0.0
  %180 = vmatpush1.msra.mxu0 0.0
  %181 = vmatprep.subr.mxu0 0.0
  %182 = vmatpush1.msra.mxu0 0.0
  %183 = vmatprep.subr.mxu0 0.0
  %184 = vmatpush1.msra.mxu0 0.0
  %185 = vmatprep.subr.mxu0 0.0
  %186 = vmatpush1.msra.mxu0 0.0
  %187 = vmatprep.subr.mxu0 0.0
  %188 = vmatpush1.msra.mxu0 0.0
  %189 = vmatprep.subr.mxu0 0.0
  %190 = vmatpush1.msra.mxu0 0.0
  %191 = vmatprep.subr.mxu0 0.0
  %192 = vmatpush1.msra.mxu0 %v159
  %193 = vmatprep.subr.mxu0 0.0
  %194 = vmatpush2.msra.mxu0 0.0
  %195 = vmatprep.subr.mxu0 0.0
  %196 = vmatpush2.msra.mxu0 0.0
  %197 = vmatprep.subr.mxu0 0.0
  %198 = vmatpush2.msra.mxu0 0.0
  %199 = vmatprep.subr.mxu0 0.0
  %200 = vmatpush2.msra.mxu0 0.0
  %201 = vmatprep.subr.mxu0 0.0
  %202 = vmatpush2.msra.mxu0 0.0
  %203 = vmatprep.subr.mxu0 0.0
  %204 = vmatpush2.msra.mxu0 0.0
  %205 = vmatprep.subr.mxu0 0.0
  %206 = vmatpush2.msra.mxu0 0.0
  %207 = vmatprep.subr.mxu0 0.0
  %208 = vmatpush2.msra.mxu0 0.0
  %209 = vmatprep.subr.mxu0 0.0
  %210 = vmatpush2.msra.mxu0 0.0
  %211 = vmatprep.subr.mxu0 0.0
  %212 = vmatpush2.msra.mxu0 0.0
  %213 = vmatprep.subr.mxu0 0.0
  %214 = vmatpush2.msra.mxu0 0.0
  %215 = vmatprep.subr.mxu0 0.0
  %216 = vmatpush2.msra.mxu0 0.0
  %217 = vmatprep.subr.mxu0 0.0
  %218 = vmatpush2.msra.mxu0 0.0
  %219 = vmatprep.subr.mxu0 0.0
  %220 = vmatpush2.msra.mxu0 0.0
  %221 = vmatprep.subr.mxu0 0.0
  %222 = vmatpush2.msra.mxu0 0.0
  %223 = vmatprep.subr.mxu0 0.0
  %224 = vmatpush2.msra.mxu0 0.0
  %225 = vmatprep.mubr.f32.mxu0 0.0
  %226 = vmatmul.mubr.f32.gmra.mxu0 %v134
  %v227 = vpop.f32.mrf.mxu0
  %v228 = vadd.f32 0.0, %v227
  %v229 = vpop.f32.mrf.mxu0
  %230 = vmatprep.mubr.f32.mxu0 0.0
  %231 = vmatmul.mubr.f32.gmra.mxu0 %v137
  %v232 = vpop.f32.mrf.mxu0
  %v233 = vadd.f32 0.0, %v232
  %v234 = vpop.f32.mrf.mxu0
  %235 = vmatprep.mubr.f32.mxu0 0.0
  %236 = vmatmul.mubr.f32.gmra.mxu0 %v140
  %v237 = vpop.f32.mrf.mxu0
  %v238 = vadd.f32 0.0, %v237
  %v239 = vpop.f32.mrf.mxu0
  %240 = vmatprep.mubr.f32.mxu0 0.0
  %241 = vmatmul.mubr.f32.gmra.mxu0 %v143
  %v242 = vpop.f32.mrf.mxu0
  %v243 = vadd.f32 0.0, %v242
  %v244 = vpop.f32.mrf.mxu0
  %245 = vmatprep.mubr.f32.mxu0 0.0
  %246 = vmatmul.mubr.f32.gmra.mxu0 %v146
  %v247 = vpop.f32.mrf.mxu0
  %v248 = vadd.f32 0.0, %v247
  %v249 = vpop.f32.mrf.mxu0
  %250 = vmatprep.mubr.f32.mxu0 0.0
  %251 = vmatmul.mubr.f32.gmra.mxu0 %v149
  %v252 = vpop.f32.mrf.mxu0
  %v253 = vadd.f32 0.0, %v252
  %v254 = vpop.f32.mrf.mxu0
  %255 = vmatprep.mubr.f32.mxu0 0.0
  %256 = vmatmul.mubr.f32.gmra.mxu0 %v152
  %v257 = vpop.f32.mrf.mxu0
  %v258 = vadd.f32 0.0, %v257
  %v259 = vpop.f32.mrf.mxu0
  %260 = vmatprep.mubr.f32.mxu0 0.0
  %261 = vmatmul.mubr.f32.gmra.mxu0 %v155
  %v262 = vpop.f32.mrf.mxu0
  %v263 = vadd.f32 0.0, %v262
  %v264 = vpop.f32.mrf.mxu0
  %265 = vdwg.mxu0
  %266 = vst.msk [vmem:[#allocation2 + $0x8] sm:$0xff] %vm121, %v228
  %267 = vst.msk [vmem:[#allocation2 + $0x10] sm:$0xff] %vm121, %v233
  %268 = vst.msk [vmem:[#allocation2 + $0x18] sm:$0xff] %vm121, %v238
  %269 = vst.msk [vmem:[#allocation2 + $0x20] sm:$0xff] %vm121, %v243
  %270 = vst.msk [vmem:[#allocation2 + $0x28] sm:$0xff] %vm121, %v248
  %271 = vst.msk [vmem:[#allocation2 + $0x30] sm:$0xff] %vm121, %v253
  %272 = vst.msk [vmem:[#allocation2 + $0x38] sm:$0xff] %vm121, %v258
  %273 = vst.msk [vmem:[#allocation2 + $0x40] sm:$0xff] %vm121, %v263
  %v275 = vlaneseq
  %v276 = vshrl.u32 %v275, 7
  %v277 = vsub.s32 0, %v276
  %v278 = vrot.slane %v32, %v277
  %v280 = vmul.f32 %v118, %v278
  %v282 = vlaneseq
  %v283 = vshrl.u32 %v282, 7
  %v284 = vsub.s32 0, %v283
  %v285 = vrot.slane %v33, %v284
  %287 = vrot.lane.b32.xlu0 %v285, 16
  %v288 = vpop.permute.xlu0 %287
  %v290 = vmul.f32 %v118, %v288
  %292 = vrot.lane.b32.xlu0 %v290, 112
  %v293 = vpop.permute.xlu0 %292
  %v295 = vsub.f32 %v280, %v293
  %v296 = vmul.f32 %v118, %v285
  %297 = vrot.lane.b32.xlu0 %v278, 16
  %v298 = vpop.permute.xlu0 %297
  %v300 = vmul.f32 %v118, %v298
  %302 = vrot.lane.b32.xlu0 %v300, 112
  %v303 = vpop.permute.xlu0 %302
  %v305 = vadd.f32 %v296, %v303
  %307 = vrot.lane.b32.xlu0 %v305, 16
  %v308 = vpop.permute.xlu0 %307
  %vm310 = vcmask 130048
  %v311 = vsel %vm310, %v295, %v308
  %s312 = scalar_lea.vmem [#allocation2], 8
  %v313 = vld [vmem:[%s312] sm:$0xff]
  %v314 = vadd.f32 %v311, %v313
  %315 = vst.msk [vmem:[%s312] sm:$0xff] %vm121, %v314
  %v316 = vmul.f32 %v314, %v278
  %v317 = vmul.f32 %v314, %v288
  %319 = vrot.lane.b32.xlu0 %v317, 112
  %v320 = vpop.permute.xlu0 %319
  %v322 = vsub.f32 %v316, %v320
  %v323 = vmul.f32 %v314, %v285
  %v324 = vmul.f32 %v314, %v298
  %326 = vrot.lane.b32.xlu0 %v324, 112
  %v327 = vpop.permute.xlu0 %326
  %v329 = vadd.f32 %v323, %v327
  %331 = vrot.lane.b32.xlu0 %v329, 16
  %v332 = vpop.permute.xlu0 %331
  %v334 = vsel %vm310, %v322, %v332
  %s335 = scalar_lea.vmem [#allocation2], 16
  %v336 = vld [vmem:[%s335] sm:$0xff]
  %v337 = vadd.f32 %v334, %v336
  %338 = vst.msk [vmem:[%s335] sm:$0xff] %vm121, %v337
  %v339 = vmul.f32 %v337, %v278
  %v340 = vmul.f32 %v337, %v288
  %342 = vrot.lane.b32.xlu0 %v340, 112
  %v343 = vpop.permute.xlu0 %342
  %v345 = vsub.f32 %v339, %v343
  %v346 = vmul.f32 %v337, %v285
  %v347 = vmul.f32 %v337, %v298
  %349 = vrot.lane.b32.xlu0 %v347, 112
  %v350 = vpop.permute.xlu0 %349
  %v352 = vadd.f32 %v346, %v350
  %354 = vrot.lane.b32.xlu0 %v352, 16
  %v355 = vpop.permute.xlu0 %354
  %v357 = vsel %vm310, %v345, %v355
  %s358 = scalar_lea.vmem [#allocation2], 24
  %v359 = vld [vmem:[%s358] sm:$0xff]
  %v360 = vadd.f32 %v357, %v359
  %361 = vst.msk [vmem:[%s358] sm:$0xff] %vm121, %v360
  %v362 = vmul.f32 %v360, %v278
  %v363 = vmul.f32 %v360, %v288
  %365 = vrot.lane.b32.xlu0 %v363, 112
  %v366 = vpop.permute.xlu0 %365
  %v368 = vsub.f32 %v362, %v366
  %v369 = vmul.f32 %v360, %v285
  %v370 = vmul.f32 %v360, %v298
  %372 = vrot.lane.b32.xlu0 %v370, 112
  %v373 = vpop.permute.xlu0 %372
  %v375 = vadd.f32 %v369, %v373
  %377 = vrot.lane.b32.xlu0 %v375, 16
  %v378 = vpop.permute.xlu0 %377
  %v380 = vsel %vm310, %v368, %v378
  %s381 = scalar_lea.vmem [#allocation2], 32
  %v382 = vld [vmem:[%s381] sm:$0xff]
  %v383 = vadd.f32 %v380, %v382
  %384 = vst.msk [vmem:[%s381] sm:$0xff] %vm121, %v383
  %v385 = vmul.f32 %v383, %v278
  %v386 = vmul.f32 %v383, %v288
  %388 = vrot.lane.b32.xlu0 %v386, 112
  %v389 = vpop.permute.xlu0 %388
  %v391 = vsub.f32 %v385, %v389
  %v392 = vmul.f32 %v383, %v285
  %v393 = vmul.f32 %v383, %v298
  %395 = vrot.lane.b32.xlu0 %v393, 112
  %v396 = vpop.permute.xlu0 %395
  %v398 = vadd.f32 %v392, %v396
  %400 = vrot.lane.b32.xlu0 %v398, 16
  %v401 = vpop.permute.xlu0 %400
  %v403 = vsel %vm310, %v391, %v401
  %s404 = scalar_lea.vmem [#allocation2], 40
  %v405 = vld [vmem:[%s404] sm:$0xff]
  %v406 = vadd.f32 %v403, %v405
  %407 = vst.msk [vmem:[%s404] sm:$0xff] %vm121, %v406
  %v408 = vmul.f32 %v406, %v278
  %v409 = vmul.f32 %v406, %v288
  %411 = vrot.lane.b32.xlu0 %v409, 112
  %v412 = vpop.permute.xlu0 %411
  %v414 = vsub.f32 %v408, %v412
  %v415 = vmul.f32 %v406, %v285
  %v416 = vmul.f32 %v406, %v298
  %418 = vrot.lane.b32.xlu0 %v416, 112
  %v419 = vpop.permute.xlu0 %418
  %v421 = vadd.f32 %v415, %v419
  %423 = vrot.lane.b32.xlu0 %v421, 16
  %v424 = vpop.permute.xlu0 %423
  %v426 = vsel %vm310, %v414, %v424
  %s427 = scalar_lea.vmem [#allocation2], 48
  %v428 = vld [vmem:[%s427] sm:$0xff]
  %v429 = vadd.f32 %v426, %v428
  %430 = vst.msk [vmem:[%s427] sm:$0xff] %vm121, %v429
  %v431 = vmul.f32 %v429, %v278
  %v432 = vmul.f32 %v429, %v288
  %434 = vrot.lane.b32.xlu0 %v432, 112
  %v435 = vpop.permute.xlu0 %434
  %v437 = vsub.f32 %v431, %v435
  %v438 = vmul.f32 %v429, %v285
  %v439 = vmul.f32 %v429, %v298
  %441 = vrot.lane.b32.xlu0 %v439, 112
  %v442 = vpop.permute.xlu0 %441
  %v444 = vadd.f32 %v438, %v442
  %446 = vrot.lane.b32.xlu0 %v444, 16
  %v447 = vpop.permute.xlu0 %446
  %v449 = vsel %vm310, %v437, %v447
  %s450 = scalar_lea.vmem [#allocation2], 56
  %v451 = vld [vmem:[%s450] sm:$0xff]
  %v452 = vadd.f32 %v449, %v451
  %453 = vst.msk [vmem:[%s450] sm:$0xff] %vm121, %v452
  %v454 = vmul.f32 %v452, %v278
  %v455 = vmul.f32 %v452, %v288
  %457 = vrot.lane.b32.xlu0 %v455, 112
  %v458 = vpop.permute.xlu0 %457
  %v460 = vsub.f32 %v454, %v458
  %v461 = vmul.f32 %v452, %v285
  %v462 = vmul.f32 %v452, %v298
  %464 = vrot.lane.b32.xlu0 %v462, 112
  %v465 = vpop.permute.xlu0 %464
  %v467 = vadd.f32 %v461, %v465
  %469 = vrot.lane.b32.xlu0 %v467, 16
  %v470 = vpop.permute.xlu0 %469
  %v472 = vsel %vm310, %v460, %v470
  %s473 = scalar_lea.vmem [#allocation2], 64
  %v474 = vld [vmem:[%s473] sm:$0xff]
  %v475 = vadd.f32 %v472, %v474
  %476 = vst.msk [vmem:[%s473] sm:$0xff] %vm121, %v475
  %v477 = vld [vmem:[#allocation2] sm:$0xff]
  %v478 = vld [vmem:[#allocation2 + $0x8] sm:$0xff]
  %v479 = vld [vmem:[#allocation2 + $0x10] sm:$0xff]
  %v480 = vld [vmem:[#allocation2 + $0x18] sm:$0xff]
  %v481 = vld [vmem:[#allocation2 + $0x20] sm:$0xff]
  %v482 = vld [vmem:[#allocation2 + $0x28] sm:$0xff]
  %v483 = vld [vmem:[#allocation2 + $0x30] sm:$0xff]
  %v484 = vld [vmem:[#allocation2 + $0x38] sm:$0xff]
  %v485 = vld [vmem:[#allocation2 + $0x40] sm:$0xff]
  %v486 = vld [vmem:[%s7] sm:$0xff]
  %v487 = vld [vmem:[%s7 + $0x8] sm:$0xff]
  %v488 = vld [vmem:[%s7 + $0x10] sm:$0xff]
  %v489 = vld [vmem:[%s7 + $0x18] sm:$0xff]
  %v490 = vld [vmem:[%s8] sm:$0x1]
  %v492 = vlaneseq
  %v493 = vshrl.u32 %v492, 7
  %v494 = vsub.s32 0, %v493
  %v495 = vrot.slane %v490, %v494
  %v498 = vsel %vm121, %v477, 0
  %v501 = vsel %vm121, %v478, 0
  %v504 = vsel %vm121, %v479, 0
  %v507 = vsel %vm121, %v480, 0
  %v510 = vsel %vm121, %v481, 0
  %v513 = vsel %vm121, %v482, 0
  %v516 = vsel %vm121, %v483, 0
  %v519 = vsel %vm121, %v484, 0
  %v522 = vsel %vm121, %v485, 0
  %524 = vmatprep.subr.mxu0 0.0
  %525 = vmatpush1.msra.mxu0 0.0
  %526 = vmatprep.subr.mxu0 0.0
  %527 = vmatpush1.msra.mxu0 0.0
  %528 = vmatprep.subr.mxu0 0.0
  %529 = vmatpush1.msra.mxu0 0.0
  %530 = vmatprep.subr.mxu0 0.0
  %531 = vmatpush1.msra.mxu0 0.0
  %532 = vmatprep.subr.mxu0 0.0
  %533 = vmatpush1.msra.mxu0 0.0
  %534 = vmatprep.subr.mxu0 0.0
  %535 = vmatpush1.msra.mxu0 0.0
  %536 = vmatprep.subr.mxu0 0.0
  %537 = vmatpush1.msra.mxu0 0.0
  %538 = vmatprep.subr.mxu0 0.0
  %539 = vmatpush1.msra.mxu0 0.0
  %540 = vmatprep.subr.mxu0 0.0
  %541 = vmatpush1.msra.mxu0 0.0
  %542 = vmatprep.subr.mxu0 0.0
  %543 = vmatpush1.msra.mxu0 0.0
  %544 = vmatprep.subr.mxu0 0.0
  %545 = vmatpush1.msra.mxu0 0.0
  %546 = vmatprep.subr.mxu0 0.0
  %547 = vmatpush1.msra.mxu0 0.0
  %548 = vmatprep.subr.mxu0 0.0
  %549 = vmatpush1.msra.mxu0 %v489
  %550 = vmatprep.subr.mxu0 0.0
  %551 = vmatpush1.msra.mxu0 %v488
  %552 = vmatprep.subr.mxu0 0.0
  %553 = vmatpush1.msra.mxu0 %v487
  %554 = vmatprep.subr.mxu0 0.0
  %555 = vmatpush1.msra.mxu0 %v486
  %556 = vmatprep.subr.mxu0 0.0
  %557 = vmatpush2.msra.mxu0 0.0
  %558 = vmatprep.subr.mxu0 0.0
  %559 = vmatpush2.msra.mxu0 0.0
  %560 = vmatprep.subr.mxu0 0.0
  %561 = vmatpush2.msra.mxu0 0.0
  %562 = vmatprep.subr.mxu0 0.0
  %563 = vmatpush2.msra.mxu0 0.0
  %564 = vmatprep.subr.mxu0 0.0
  %565 = vmatpush2.msra.mxu0 0.0
  %566 = vmatprep.subr.mxu0 0.0
  %567 = vmatpush2.msra.mxu0 0.0
  %568 = vmatprep.subr.mxu0 0.0
  %569 = vmatpush2.msra.mxu0 0.0
  %570 = vmatprep.subr.mxu0 0.0
  %571 = vmatpush2.msra.mxu0 0.0
  %572 = vmatprep.subr.mxu0 0.0
  %573 = vmatpush2.msra.mxu0 0.0
  %574 = vmatprep.subr.mxu0 0.0
  %575 = vmatpush2.msra.mxu0 0.0
  %576 = vmatprep.subr.mxu0 0.0
  %577 = vmatpush2.msra.mxu0 0.0
  %578 = vmatprep.subr.mxu0 0.0
  %579 = vmatpush2.msra.mxu0 0.0
  %580 = vmatprep.subr.mxu0 0.0
  %581 = vmatpush2.msra.mxu0 0.0
  %582 = vmatprep.subr.mxu0 0.0
  %583 = vmatpush2.msra.mxu0 0.0
  %584 = vmatprep.subr.mxu0 0.0
  %585 = vmatpush2.msra.mxu0 0.0
  %586 = vmatprep.subr.mxu0 0.0
  %587 = vmatpush2.msra.mxu0 0.0
  %588 = vmatprep.mubr.f32.mxu0 0.0
  %589 = vmatmul.mubr.f32.gmra.mxu0 %v498
  %v590 = vpop.f32.mrf.mxu0
  %v591 = vadd.f32 %v495, %v590
  %v592 = vpop.f32.mrf.mxu0
  %593 = vmatprep.mubr.f32.mxu0 0.0
  %594 = vmatmul.mubr.f32.gmra.mxu0 %v501
  %v595 = vpop.f32.mrf.mxu0
  %v596 = vadd.f32 %v495, %v595
  %v597 = vpop.f32.mrf.mxu0
  %598 = vmatprep.mubr.f32.mxu0 0.0
  %599 = vmatmul.mubr.f32.gmra.mxu0 %v504
  %v600 = vpop.f32.mrf.mxu0
  %v601 = vadd.f32 %v495, %v600
  %v602 = vpop.f32.mrf.mxu0
  %603 = vmatprep.mubr.f32.mxu0 0.0
  %604 = vmatmul.mubr.f32.gmra.mxu0 %v507
  %v605 = vpop.f32.mrf.mxu0
  %v606 = vadd.f32 %v495, %v605
  %v607 = vpop.f32.mrf.mxu0
  %608 = vmatprep.mubr.f32.mxu0 0.0
  %609 = vmatmul.mubr.f32.gmra.mxu0 %v510
  %v610 = vpop.f32.mrf.mxu0
  %v611 = vadd.f32 %v495, %v610
  %v612 = vpop.f32.mrf.mxu0
  %613 = vmatprep.mubr.f32.mxu0 0.0
  %614 = vmatmul.mubr.f32.gmra.mxu0 %v513
  %v615 = vpop.f32.mrf.mxu0
  %v616 = vadd.f32 %v495, %v615
  %v617 = vpop.f32.mrf.mxu0
  %618 = vmatprep.mubr.f32.mxu0 0.0
  %619 = vmatmul.mubr.f32.gmra.mxu0 %v516
  %v620 = vpop.f32.mrf.mxu0
  %v621 = vadd.f32 %v495, %v620
  %v622 = vpop.f32.mrf.mxu0
  %623 = vmatprep.mubr.f32.mxu0 0.0
  %624 = vmatmul.mubr.f32.gmra.mxu0 %v519
  %v625 = vpop.f32.mrf.mxu0
  %v626 = vadd.f32 %v495, %v625
  %v627 = vpop.f32.mrf.mxu0
  %628 = vmatprep.mubr.f32.mxu0 0.0
  %629 = vmatmul.mubr.f32.gmra.mxu0 %v522
  %v630 = vpop.f32.mrf.mxu0
  %v631 = vadd.f32 %v495, %v630
  %v632 = vpop.f32.mrf.mxu0
  %633 = vdwg.mxu0
  %634 = vst.msk [vmem:[%s9] sm:$0xff] %vm43, %v591
  %635 = vst.msk [vmem:[%s9 + $0x8] sm:$0xff] %vm43, %v596
  %636 = vst.msk [vmem:[%s9 + $0x10] sm:$0xff] %vm43, %v601
  %637 = vst.msk [vmem:[%s9 + $0x18] sm:$0xff] %vm43, %v606
  %638 = vst.msk [vmem:[%s9 + $0x20] sm:$0xff] %vm43, %v611
  %639 = vst.msk [vmem:[%s9 + $0x28] sm:$0xff] %vm43, %v616
  %640 = vst.msk [vmem:[%s9 + $0x30] sm:$0xff] %vm43, %v621
  %641 = vst.msk [vmem:[%s9 + $0x38] sm:$0xff] %vm43, %v626
  %642 = vst.msk [vmem:[%s9 + $0x40] sm:$0xff] %vm43, %v631
  // Predicated region
  $region38: #{tpu_custom_call.1} parent=0 // pred_check
    _
  $region39: #{tpu_custom_call.1} parent=0 // pred_check_branch
    %644 = sbr.rel (0) target = $region41
  $region40: #{tpu_custom_call.1} parent=0 // pred_region
    _
  $region41: #{tpu_custom_call.1} parent=0 // pred_fallthru
    _
  // Predicated region
  $region42: #{tpu_custom_call.1} parent=0 // pred_check
    _
  $region43: #{tpu_custom_call.1} parent=0 // pred_check_branch
    %646 = sbr.rel (0) target = $region45
  $region44: #{tpu_custom_call.1} parent=0 // pred_region
    _
  $region45: #{tpu_custom_call.1} parent=0 // pred_fallthru
    _

</llo_original>
